<compile_context>
chip_gen: v7x
topology: tpu7x:2x2x1
jax: 0.10.0
libtpu: 0.0.40
codegen_flags: <defaults>
</compile_context>

<pallas_src>
import jax
import jax.numpy as jnp
from jax.experimental import pallas as pl
from jax.experimental.pallas import tpu as pltpu


def _round_up(v, m):
    return (v + m - 1) // m * m


def _pick_tile(padded, granule, max_tile):
    """Pick a tile (multiple of `granule`) for an axis already padded to
    `granule`, preferring a large divisor of `padded` (no extra padding) and
    only re-padding to a multiple of `max_tile` as a last resort.

    Returns (tile, final_padded_size)."""
    max_tile = max(granule, max_tile // granule * granule)
    if padded <= max_tile:
        return padded, padded
    d = max_tile
    while d >= max(granule, max_tile // 2):
        if padded % d == 0:
            return d, padded
        d -= granule
    return max_tile, _round_up(padded, max_tile)


def _make_kernel(x_resident, tk):
    def gpn_conv_kernel(a_ref, x_ref, w_ref, b_ref, o_ref, acc_ref):
        k = pl.program_id(1)

        @pl.when(k == 0)
        def _init():
            acc_ref[...] = jnp.zeros_like(acc_ref)

        if x_resident:
            # x is the whole (padded) feature matrix, resident in VMEM; slice
            # the current K chunk.  tk is a multiple of 128, so the start is
            # sublane/lane aligned and the slice is free.
            start = pl.multiple_of(k * tk, 128)
            x_blk = x_ref[pl.ds(start, tk), :]
        else:
            x_blk = x_ref[...]

        # Aggregation (+ residual folded in as A' = A + I): bf16 x bf16 MXU
        # matmul with f32 accumulation.
        acc_ref[...] += jnp.dot(a_ref[...], x_blk,
                                preferred_element_type=jnp.float32)

        @pl.when(k == pl.num_programs(1) - 1)
        def _epilogue():
            # Linear epilogue, once per row tile: (tm, F_in) @ (F_in, F_out) + b.
            out = jnp.dot(acc_ref[...], w_ref[...],
                          preferred_element_type=jnp.float32) + b_ref[...]
            o_ref[...] = out.astype(o_ref.dtype)

    return gpn_conv_kernel


def gpn_conv(x, edge_index, weight, bias, *, tm=512, tk=2048,
             x_resident_budget_bytes=4 << 20):
    """x: [N, F_in] f32, edge_index: [2, E] int32,
       weight: [F_out, F_in] (PyTorch Linear layout), bias: [F_out]."""
    n, f_in = x.shape
    f_out = weight.shape[0]

    # ---- padding: lane-dense feature dims; node dims padded to 16/128 first,
    #      then tiles chosen to divide the padded sizes (minimal waste) ----
    f_in_p = _round_up(max(f_in, 128), 128)
    f_out_p = _round_up(max(f_out, 128), 128)

    n_rows_16 = _round_up(n, 16)     # bf16 sublane-pair granule for A' rows
    n_cols_128 = _round_up(n, 128)   # lane granule for A' cols / x rows

    # v7x has 2 TensorCores; keep >= 2 row tiles (sharded via "parallel") when
    # there are enough rows to make splitting worthwhile.
    tm_cap = tm
    if n_rows_16 >= 256:
        tm_cap = min(tm_cap, _round_up(n_rows_16 // 2, 16))

    tm, n_rows = _pick_tile(n_rows_16, 16, tm_cap)
    tk, n_cols = _pick_tile(n_cols_128, 128, tk)

    # ---- index-setup glue in plain JAX (cheap relative to the matmuls) ----
    # Scatter edges directly into the padded bf16 buffer (one pass); integer
    # counts <= 256 are exact in bf16.  The +I diagonal folds in the residual.
    row, col = edge_index[0], edge_index[1]
    diag = jnp.arange(n, dtype=jnp.int32)
    adj_p = (jnp.zeros((n_rows, n_cols), dtype=jnp.bfloat16)
             .at[row, col].add(1.0)
             .at[diag, diag].add(1.0))

    x_p = jnp.pad(x, ((0, n_cols - n), (0, f_in_p - f_in))).astype(jnp.bfloat16)
    w_p = jnp.pad(weight.T, ((0, f_in_p - f_in), (0, f_out_p - f_out)))  # f32
    b_p = jnp.pad(bias, (0, f_out_p - f_out)).reshape(1, f_out_p)

    grid = (n_rows // tm, n_cols // tk)

    # Keep x fully VMEM-resident (fetched once, reused by every row tile) when
    # its double-buffered footprint fits the budget; otherwise stream it tiled.
    x_bytes = n_cols * f_in_p * 2
    x_resident = 2 * x_bytes <= 2 * x_resident_budget_bytes

    in_specs = [pl.BlockSpec((tm, tk), lambda i, k: (i, k))]          # A' tile
    if x_resident:
        in_specs.append(pl.BlockSpec((n_cols, f_in_p), lambda i, k: (0, 0)))
    else:
        in_specs.append(pl.BlockSpec((tk, f_in_p), lambda i, k: (k, 0)))
    in_specs += [
        pl.BlockSpec((f_in_p, f_out_p), lambda i, k: (0, 0)),          # W
        pl.BlockSpec((1, f_out_p), lambda i, k: (0, 0)),               # bias
    ]

    # Explicit scoped-VMEM budget covering double-buffered operands + scratch.
    vmem_bytes = (2 * tm * tk * 2                                     # A' bf16
                  + (2 * x_bytes if x_resident else 2 * tk * f_in_p * 2)
                  + 2 * f_in_p * f_out_p * 4                          # W
                  + 2 * 8 * f_out_p * 4                               # bias
                  + 2 * tm * f_out_p * 4                              # out
                  + tm * f_in_p * 4)                                  # acc
    vmem_limit = min(max(vmem_bytes + (2 << 20), 16 << 20), 40 << 20)

    out_p = pl.pallas_call(
        _make_kernel(x_resident, tk),
        out_shape=jax.ShapeDtypeStruct((n_rows, f_out_p), x.dtype),
        grid_spec=pltpu.PrefetchScalarGridSpec(
            num_scalar_prefetch=0,
            grid=grid,
            in_specs=in_specs,
            out_specs=pl.BlockSpec((tm, f_out_p), lambda i, k: (i, 0)),
            scratch_shapes=[pltpu.VMEM((tm, f_in_p), jnp.float32)],
        ),
        compiler_params=pltpu.CompilerParams(
            dimension_semantics=("parallel", "arbitrary"),
            vmem_limit_bytes=vmem_limit),
    )(adj_p, x_p, w_p, b_p)

    return out_p[:n, :f_out]


def gpn_conv_ref(x, edge_index, weight, bias):
    """Pure-JAX f32 reference matching the PyTorch forward."""
    row, col = edge_index[0], edge_index[1]
    agg = jnp.zeros_like(x).at[row].add(x[col])
    h = x + agg
    return h @ weight.T + bias


def _assert_close(out, ref, tol):
    err = float(jnp.max(jnp.abs(out - ref)))
    scale = float(jnp.max(jnp.abs(ref)))
    assert err <= tol * scale + 1e-5, f"max err {err:.3e} vs scale {scale:.3e}"


def _run_case(key, n, e, f_in, f_out, tol):
    k_x, k_e, k_w, k_b = jax.random.split(key, 4)
    x = jax.random.normal(k_x, (n, f_in), dtype=jnp.float32)
    edge_index = jax.random.randint(k_e, (2, e), 0, n, dtype=jnp.int32)
    bound = 1.0 / (f_in ** 0.5)
    weight = jax.random.uniform(k_w, (f_out, f_in), dtype=jnp.float32,
                                minval=-bound, maxval=bound)
    bias = jax.random.uniform(k_b, (f_out,), dtype=jnp.float32,
                              minval=-bound, maxval=bound)

    out = jax.block_until_ready(gpn_conv(x, edge_index, weight, bias))
    ref = gpn_conv_ref(x, edge_index, weight, bias)
    assert out.shape == (n, f_out)
    _assert_close(out, ref, tol)


if __name__ == "__main__":
    key = jax.random.PRNGKey(0)
    k1, k2 = jax.random.split(key)

    # Small shape matching the module defaults: input_size=16, hidden=8, gates=4.
    _run_case(k1, n=8, e=16, f_in=16, f_out=8 * 4, tol=2e-2)

    # Larger shape exercising divisor-based tiling (n_rows=608 -> 2x tm=304,
    # n_cols=640 -> single tk=640 step) and the resident-x path.
    _run_case(k2, n=600, e=4000, f_in=48, f_out=40 * 4, tol=2e-2)

    print("KERNEL_OK")
</pallas_src>

<mosaic_0001>
module attributes {stable_mosaic.version = 11 : i64} {
  func.func @gpn_conv_kernel(%arg0: i32, %arg1: i32, %arg2: memref<16x128xbf16, #tpu.memory_space<vmem>>, %arg3: memref<128x128xbf16, #tpu.memory_space<vmem>>, %arg4: memref<128x128xf32, #tpu.memory_space<vmem>>, %arg5: memref<1x128xf32, #tpu.memory_space<vmem>>, %arg6: memref<16x128xf32, #tpu.memory_space<vmem>>, %arg7: memref<16x128xf32, #tpu.memory_space<vmem>>) attributes {dimension_semantics = [#tpu.dimension_semantics<parallel>, #tpu.dimension_semantics<arbitrary>], iteration_bounds = array<i64: 1, 1>, scalar_prefetch = 0 : i64, scratch_operands = 1 : i64, tpu.core_type = #tpu.core_type<tc>, window_params = [{transform_indices = @transform_0, window_bounds = array<i64: 16, 128>}, {pipeline_mode = #tpu.pipeline_mode<synchronous>, transform_indices = @transform_1, window_bounds = array<i64: 128, 128>}, {pipeline_mode = #tpu.pipeline_mode<synchronous>, transform_indices = @transform_2, window_bounds = array<i64: 128, 128>}, {pipeline_mode = #tpu.pipeline_mode<synchronous>, transform_indices = @transform_3, window_bounds = array<i64: 1, 128>}, {transform_indices = @transform_4, window_bounds = array<i64: 16, 128>}]} {
    %c0_i32 = arith.constant 0 : i32
    %0 = arith.cmpi eq, %arg1, %c0_i32 : i32
    %1 = arith.extui %0 : i1 to i32
    %c0_i32_0 = arith.constant 0 : i32
    %2 = arith.cmpi ne, %1, %c0_i32_0 : i32
    scf.if %2 {
      %cst_9 = arith.constant 0.000000e+00 : f32
      %15 = vector.broadcast %cst_9 : f32 to vector<16x128xf32>
      %c0_10 = arith.constant 0 : index
      %c0_11 = arith.constant 0 : index
      %16 = vector.load %arg7[%c0_10, %c0_11] : memref<16x128xf32, #tpu.memory_space<vmem>>, vector<16x128xf32>
      tpu.vector_store %arg7[%c0_10, %c0_11], %15 {strides = array<i32>} : memref<16x128xf32, #tpu.memory_space<vmem>>, vector<16x128xf32>,
    } else {
    }
    %c128_i32 = arith.constant 128 : i32
    %3 = arith.muli %arg1, %c128_i32 : i32
    %4 = tpu.assume_multiple %3, 128 : i32
    %5 = arith.index_cast %4 : i32 to index
    %c0 = arith.constant 0 : index
    %6 = vector.load %arg3[%5, %c0] : memref<128x128xbf16, #tpu.memory_space<vmem>>, vector<128x128xbf16>
    %c0_1 = arith.constant 0 : index
    %c0_2 = arith.constant 0 : index
    %7 = vector.load %arg7[%c0_1, %c0_2] : memref<16x128xf32, #tpu.memory_space<vmem>>, vector<16x128xf32>
    %c0_3 = arith.constant 0 : index
    %c0_4 = arith.constant 0 : index
    %8 = vector.load %arg2[%c0_3, %c0_4] : memref<16x128xbf16, #tpu.memory_space<vmem>>, vector<16x128xbf16>
    %cst = arith.constant dense<0.000000e+00> : vector<16x128xf32>
    %9 = tpu.matmul %8, %6, %cst {dimension_numbers = #tpu.dot_dimension_numbers<[1], [0], [0], [1], [0, 0, 1, 1], [], []>} : vector<16x128xbf16>, vector<128x128xbf16>, vector<16x128xf32> -> vector<16x128xf32>
    %10 = arith.addf %7, %9 : vector<16x128xf32>
    %c0_5 = arith.constant 0 : index
    %c0_6 = arith.constant 0 : index
    %11 = vector.load %arg7[%c0_5, %c0_6] : memref<16x128xf32, #tpu.memory_space<vmem>>, vector<16x128xf32>
    tpu.vector_store %arg7[%c0_5, %c0_6], %10 {strides = array<i32>} : memref<16x128xf32, #tpu.memory_space<vmem>>, vector<16x128xf32>,
    %c0_i32_7 = arith.constant 0 : i32
    %12 = arith.cmpi eq, %arg1, %c0_i32_7 : i32
    %13 = arith.extui %12 : i1 to i32
    %c0_i32_8 = arith.constant 0 : i32
    %14 = arith.cmpi ne, %13, %c0_i32_8 : i32
    scf.if %14 {
      %c0_9 = arith.constant 0 : index
      %c0_10 = arith.constant 0 : index
      %15 = vector.load %arg7[%c0_9, %c0_10] : memref<16x128xf32, #tpu.memory_space<vmem>>, vector<16x128xf32>
      %c0_11 = arith.constant 0 : index
      %c0_12 = arith.constant 0 : index
      %16 = vector.load %arg4[%c0_11, %c0_12] : memref<128x128xf32, #tpu.memory_space<vmem>>, vector<128x128xf32>
      %cst_13 = arith.constant dense<0.000000e+00> : vector<16x128xf32>
      %17 = tpu.matmul %15, %16, %cst_13 {dimension_numbers = #tpu.dot_dimension_numbers<[1], [0], [0], [1], [0, 0, 1, 1], [], []>} : vector<16x128xf32>, vector<128x128xf32>, vector<16x128xf32> -> vector<16x128xf32>
      %c0_14 = arith.constant 0 : index
      %c0_15 = arith.constant 0 : index
      %18 = vector.load %arg5[%c0_14, %c0_15] : memref<1x128xf32, #tpu.memory_space<vmem>>, vector<1x128xf32>
      %19 = vector.broadcast %18 : vector<1x128xf32> to vector<16x128xf32>
      %20 = arith.addf %17, %19 : vector<16x128xf32>
      %c0_16 = arith.constant 0 : index
      %c0_17 = arith.constant 0 : index
      %21 = vector.load %arg6[%c0_16, %c0_17] : memref<16x128xf32, #tpu.memory_space<vmem>>, vector<16x128xf32>
      tpu.vector_store %arg6[%c0_16, %c0_17], %20 {strides = array<i32>} : memref<16x128xf32, #tpu.memory_space<vmem>>, vector<16x128xf32>,
    } else {
    }
    return
  }
  func.func @transform_0(%arg0: i32, %arg1: i32) -> (i32, i32) {
    %c0_i32 = arith.constant 0 : i32
    return %arg0, %arg1 : i32, i32
  }
  func.func @transform_1(%arg0: i32, %arg1: i32) -> (i32, i32) {
    %c0_i32 = arith.constant 0 : i32
    %c0_i32_0 = arith.constant 0 : i32
    %c0_i32_1 = arith.constant 0 : i32
    return %c0_i32, %c0_i32_0 : i32, i32
  }
  func.func @transform_2(%arg0: i32, %arg1: i32) -> (i32, i32) {
    %c0_i32 = arith.constant 0 : i32
    %c0_i32_0 = arith.constant 0 : i32
    %c0_i32_1 = arith.constant 0 : i32
    return %c0_i32, %c0_i32_0 : i32, i32
  }
  func.func @transform_3(%arg0: i32, %arg1: i32) -> (i32, i32) {
    %c0_i32 = arith.constant 0 : i32
    %c0_i32_0 = arith.constant 0 : i32
    %c0_i32_1 = arith.constant 0 : i32
    return %c0_i32, %c0_i32_0 : i32, i32
  }
  func.func @transform_4(%arg0: i32, %arg1: i32) -> (i32, i32) {
    %c0_i32 = arith.constant 0 : i32
    %c0_i32_0 = arith.constant 0 : i32
    return %arg0, %c0_i32 : i32, i32
  }
}

</mosaic_0001>

<llo_original>
// kernel: tpu_custom_call.1
$region0: #{tpu_custom_call.1}
  #allocation0 [shape = 'u32[]', space=smem, size = 0x4, offset = 0x4, fixed_abs, tag = 'smem constant byte address 0x4 - core index']
  #allocation1 [shape = 'u32[144,128]{1,0:T(1,128)}', space=vmem, size = 0x12000, scoped, tag = 'internal scratch']
  #allocation2 [shape = 'f32[16,128]{1,0:T(8,128)}', space=vmem, size = 0x2000, scoped, tag = 'scratch operand']
  %s0 = inlined_call_operand.hbm [shape: bf16[16,128], index: 0, kind: input, shape index: {}]
  %s1 = inlined_call_operand.hbm [shape: bf16[128,128], index: 1, kind: input, shape index: {}]
  %s2 = inlined_call_operand.hbm [shape: f32[128,128], index: 2, kind: input, shape index: {}]
  %s3 = inlined_call_operand.vmem [shape: f32[1,128], index: 3, kind: input, shape index: {}]
  %s4 = inlined_call_operand.hbm [shape: f32[16,128], index: 4, kind: output, shape index: {}]
  %s5 = sld [smem:[#allocation0]]
  $region46: #{tpu_custom_call.1} parent=0
    _
  %s7 = ssub.s32 1, %s5
  %s8 = scalar_select 0, %s7, %s5
  $region1: #{tpu_custom_call.1} parent=0
    #allocation3 [shape = 'u8[4096]{0}', space=vmem, size = 0x1000, scoped, tag = 'input window, operand 0, single buffered']
    #allocation4 [shape = 's32[1]{0}', space=sflag, size = 0x4, scoped, tag = 'scoped memory for tpu_custom_call.1']
    #allocation5 [shape = 's32[1]{0}', space=sflag, size = 0x4, scoped, tag = 'scoped memory for tpu_custom_call.1']
    #allocation6 [shape = 'u8[32768]{0}', space=vmem, size = 0x8000, scoped, tag = 'input window, operand 1, single buffered']
    #allocation7 [shape = 's32[1]{0}', space=sflag, size = 0x4, scoped, tag = 'scoped memory for tpu_custom_call.1']
    #allocation8 [shape = 'u8[65536]{0}', space=vmem, size = 0x10000, scoped, tag = 'input window, operand 2, single buffered']
    #allocation9 [shape = 'u8[8192]{0}', space=vmem, size = 0x2000, scoped, tag = 'output window, operand 0, single buffered']
    %9 = vsyncpa [#allocation4], 0
    %10 = vsyncpa [#allocation7], 0
    %11 = vsyncpa [#allocation5], 0
    // Predicated region
    $region2: #{tpu_custom_call.1} parent=1 // pred_check
      _
    $region3: #{tpu_custom_call.1} parent=1 // pred_check_branch
      %13 = sbr.rel (0) target = $region5
    $region4: #{tpu_custom_call.1} parent=1 // pred_region
      %s15 = ssub.s32 128, 128
      %16 = vsyncadd [#allocation4], %s15
      %s17 = sshll.u32 [#allocation3], 4
      %s18 = int_to_ptr.vmem [resolvable:$true] %s17
      %23 = dma.hbm_to_vmem [thread:$0]  %s0, 128, %s18, [#allocation4], 64, 64, 4
    $region5: #{tpu_custom_call.1} parent=1 // pred_fallthru
      _
    // Predicated region
    $region6: #{tpu_custom_call.1} parent=1 // pred_check
      _
    $region7: #{tpu_custom_call.1} parent=1 // pred_check_branch
      %25 = sbr.rel (0) target = $region9
    $region8: #{tpu_custom_call.1} parent=1 // pred_region
      %s27 = ssub.s32 1024, 1024
      %28 = vsyncadd [#allocation7], %s27
      %s29 = sshll.u32 [#allocation6], 4
      %s30 = int_to_ptr.vmem [resolvable:$true] %s29
      %35 = dma.hbm_to_vmem [thread:$0]  %s1, 1024, %s30, [#allocation7], 64, 64, 4
    $region9: #{tpu_custom_call.1} parent=1 // pred_fallthru
      _
    // Predicated region
    $region10: #{tpu_custom_call.1} parent=1 // pred_check
      _
    $region11: #{tpu_custom_call.1} parent=1 // pred_check_branch
      %37 = sbr.rel (0) target = $region13
    $region12: #{tpu_custom_call.1} parent=1 // pred_region
      %s39 = ssub.s32 2048, 2048
      %40 = vsyncadd [#allocation7], %s39
      %s41 = sshll.u32 [#allocation8], 4
      %s42 = int_to_ptr.vmem [resolvable:$true] %s41
      %47 = dma.hbm_to_vmem [thread:$0]  %s2, 2048, %s42, [#allocation7], 128, 128, 8
    $region13: #{tpu_custom_call.1} parent=1 // pred_fallthru
      _
    // Predicated region
    $region14: #{tpu_custom_call.1} parent=1 // pred_check
      _
    $region15: #{tpu_custom_call.1} parent=1 // pred_check_branch
      %49 = sbr.rel (0) target = $region17
    $region16: #{tpu_custom_call.1} parent=1 // pred_region
      _
    $region17: #{tpu_custom_call.1} parent=1 // pred_fallthru
      _
    // Predicated region
    $region18: #{tpu_custom_call.1} parent=1 // pred_check
      _
    $region19: #{tpu_custom_call.1} parent=1 // pred_check_branch
      %51 = sbr.rel (0) target = $region21
    $region20: #{tpu_custom_call.1} parent=1 // pred_region
      %52 = dma.done [#allocation4], 128
    $region21: #{tpu_custom_call.1} parent=1 // pred_fallthru
      _
    // Predicated region
    $region22: #{tpu_custom_call.1} parent=1 // pred_check
      _
    $region23: #{tpu_custom_call.1} parent=1 // pred_check_branch
      %54 = sbr.rel (0) target = $region25
    $region24: #{tpu_custom_call.1} parent=1 // pred_region
      %55 = dma.done [#allocation7], 1024
    $region25: #{tpu_custom_call.1} parent=1 // pred_fallthru
      _
    // Predicated region
    $region26: #{tpu_custom_call.1} parent=1 // pred_check
      _
    $region27: #{tpu_custom_call.1} parent=1 // pred_check_branch
      %57 = sbr.rel (0) target = $region29
    $region28: #{tpu_custom_call.1} parent=1 // pred_region
      %58 = dma.done [#allocation7], 2048
    $region29: #{tpu_custom_call.1} parent=1 // pred_fallthru
      _
    %p60 = scmp.eq.s32.totalorder 0, 0
    // Predicated region
    $region30: #{tpu_custom_call.1} parent=1 // pred_check
      %p61 = pneg %p60
    $region31: #{tpu_custom_call.1} parent=1 // pred_check_branch
      %63 = sbr.rel (%p61) target = $region33
    $region32: #{tpu_custom_call.1} parent=1 // pred_region
      %64 = vst [vmem:[#allocation2] sm:$0xff] 0.0
      %65 = vst [vmem:[#allocation2 + $0x8] sm:$0xff] 0.0
    $region33: #{tpu_custom_call.1} parent=1 // pred_fallthru
      _
    %s66 = smul.u32 0, 128
    %s67 = sshra.s32 %s66, 3
    %s68 = sand.u32 %s66, 7
    %s69 = smul.addr %s67, 4
    %s70 = scalar_lea.vmem [#allocation6], %s69
    %v71 = vld [vmem:[%s70] sm:$0xf]
    %v72 = vld [vmem:[%s70 + $0x4] sm:$0xf]
    %v73 = vld [vmem:[%s70 + $0x8] sm:$0xf]
    %v74 = vld [vmem:[%s70 + $0xc] sm:$0xf]
    %v75 = vld [vmem:[%s70 + $0x10] sm:$0xf]
    %v76 = vld [vmem:[%s70 + $0x14] sm:$0xf]
    %v77 = vld [vmem:[%s70 + $0x18] sm:$0xf]
    %v78 = vld [vmem:[%s70 + $0x1c] sm:$0xf]
    %v79 = vld [vmem:[%s70 + $0x20] sm:$0xf]
    %v80 = vld [vmem:[%s70 + $0x24] sm:$0xf]
    %v81 = vld [vmem:[%s70 + $0x28] sm:$0xf]
    %v82 = vld [vmem:[%s70 + $0x2c] sm:$0xf]
    %v83 = vld [vmem:[%s70 + $0x30] sm:$0xf]
    %v84 = vld [vmem:[%s70 + $0x34] sm:$0xf]
    %v85 = vld [vmem:[%s70 + $0x38] sm:$0xf]
    %v86 = vld [vmem:[%s70 + $0x3c] sm:$0xf]
    %v87 = vld [vmem:[#allocation2] sm:$0xff]
    %v88 = vld [vmem:[#allocation2 + $0x8] sm:$0xff]
    %v89 = vld [vmem:[#allocation3] sm:$0xf]
    %v90 = vld [vmem:[#allocation3 + $0x4] sm:$0xf]
    %v93 = vunpack.c.l.b16 %v89
    %v94 = vunpack.c.l.b16 %v90
    %v95 = vpack.c.b16 %v94, %v93
    %v113 = vunpack.c.l.b16 %v71
    %v114 = vunpack.c.l.b16 %v72
    %v115 = vunpack.c.l.b16 %v73
    %v116 = vunpack.c.l.b16 %v74
    %v117 = vunpack.c.l.b16 %v75
    %v118 = vunpack.c.l.b16 %v76
    %v119 = vunpack.c.l.b16 %v77
    %v120 = vunpack.c.l.b16 %v78
    %v121 = vunpack.c.l.b16 %v79
    %v122 = vunpack.c.l.b16 %v80
    %v123 = vunpack.c.l.b16 %v81
    %v124 = vunpack.c.l.b16 %v82
    %v125 = vunpack.c.l.b16 %v83
    %v126 = vunpack.c.l.b16 %v84
    %v127 = vunpack.c.l.b16 %v85
    %v128 = vunpack.c.l.b16 %v86
    %v129 = vpack.c.b16 %v114, %v113
    %v130 = vpack.c.b16 %v116, %v115
    %v131 = vpack.c.b16 %v118, %v117
    %v132 = vpack.c.b16 %v120, %v119
    %v133 = vpack.c.b16 %v122, %v121
    %v134 = vpack.c.b16 %v124, %v123
    %v135 = vpack.c.b16 %v126, %v125
    %v136 = vpack.c.b16 %v128, %v127
    %145 = vmatprep.subr.bf16.mxu0 0
    %146 = vmatpush1.bf16.msra.mxu0 %v129
    %147 = vmatprep.subr.bf16.mxu0 0
    %148 = vmatpush1.bf16.msra.mxu0 %v130
    %149 = vmatprep.subr.bf16.mxu0 0
    %150 = vmatpush1.bf16.msra.mxu0 %v131
    %151 = vmatprep.subr.bf16.mxu0 0
    %152 = vmatpush1.bf16.msra.mxu0 %v132
    %153 = vmatprep.subr.bf16.mxu0 0
    %154 = vmatpush1.bf16.msra.mxu0 %v133
    %155 = vmatprep.subr.bf16.mxu0 0
    %156 = vmatpush1.bf16.msra.mxu0 %v134
    %157 = vmatprep.subr.bf16.mxu0 0
    %158 = vmatpush1.bf16.msra.mxu0 %v135
    %159 = vmatprep.subr.bf16.mxu0 0
    %160 = vmatpush1.bf16.msra.mxu0 %v136
    %161 = vmatprep.subr.bf16.mxu0 0
    %162 = vmatpush1.bf16.msra.mxu0 0
    %163 = vmatprep.subr.bf16.mxu0 0
    %164 = vmatpush1.bf16.msra.mxu0 0
    %165 = vmatprep.subr.bf16.mxu0 0
    %166 = vmatpush1.bf16.msra.mxu0 0
    %167 = vmatprep.subr.bf16.mxu0 0
    %168 = vmatpush1.bf16.msra.mxu0 0
    %169 = vmatprep.subr.bf16.mxu0 0
    %170 = vmatpush1.bf16.msra.mxu0 0
    %171 = vmatprep.subr.bf16.mxu0 0
    %172 = vmatpush1.bf16.msra.mxu0 0
    %173 = vmatprep.subr.bf16.mxu0 0
    %174 = vmatpush1.bf16.msra.mxu0 0
    %175 = vmatprep.subr.bf16.mxu0 0
    %176 = vmatpush1.bf16.msra.mxu0 0
    %177 = vmatprep.mubr.bf16.mxu0 0
    %178 = vmatmul.mubr.bf16.gmra.mrb[0].mxu0 %v95
    %v179 = vpop.f32.mrb[0].mxu0
    %v180 = vadd.f32 0.0, %v179
    %v181 = vpop.f32.mrb[0].mxu0
    %v182 = vpop.f32.mrb[0].mxu0
    %v183 = vadd.f32 0.0, %v182
    %v184 = vpop.f32.mrb[0].mxu0
    %185 = vdwg.mxu0
    %v186 = vadd.f32 %v87, %v180
    %v187 = vadd.f32 %v88, %v183
    %188 = vst [vmem:[#allocation2] sm:$0xff] %v186
    %189 = vst [vmem:[#allocation2 + $0x8] sm:$0xff] %v187
    // Predicated region
    $region34: #{tpu_custom_call.1} parent=1 // pred_check
      %p190 = pneg %p60
    $region35: #{tpu_custom_call.1} parent=1 // pred_check_branch
      %192 = sbr.rel (%p190) target = $region37
    $region36: #{tpu_custom_call.1} parent=1 // pred_region
      %v193 = vld [vmem:[#allocation2] sm:$0xff]
      %v194 = vld [vmem:[#allocation2 + $0x8] sm:$0xff]
      %v195 = vld [vmem:[#allocation8] sm:$0xff]
      %v196 = vld [vmem:[#allocation8 + $0x8] sm:$0xff]
      %v197 = vld [vmem:[#allocation8 + $0x10] sm:$0xff]
      %v198 = vld [vmem:[#allocation8 + $0x18] sm:$0xff]
      %v199 = vld [vmem:[#allocation8 + $0x20] sm:$0xff]
      %v200 = vld [vmem:[#allocation8 + $0x28] sm:$0xff]
      %v201 = vld [vmem:[#allocation8 + $0x30] sm:$0xff]
      %v202 = vld [vmem:[#allocation8 + $0x38] sm:$0xff]
      %v203 = vld [vmem:[#allocation8 + $0x40] sm:$0xff]
      %v204 = vld [vmem:[#allocation8 + $0x48] sm:$0xff]
      %v205 = vld [vmem:[#allocation8 + $0x50] sm:$0xff]
      %v206 = vld [vmem:[#allocation8 + $0x58] sm:$0xff]
      %v207 = vld [vmem:[#allocation8 + $0x60] sm:$0xff]
      %v208 = vld [vmem:[#allocation8 + $0x68] sm:$0xff]
      %v209 = vld [vmem:[#allocation8 + $0x70] sm:$0xff]
      %v210 = vld [vmem:[#allocation8 + $0x78] sm:$0xff]
      %v211 = vld [vmem:[%s3] sm:$0x1]
      %v213 = vlaneseq
      %v214 = vshrl.u32 %v213, 7
      %v215 = vsub.s32 0, %v214
      %v216 = vrot.slane %v211, %v215
      %218 = vmatprep.subr.mxu0 0.0
      %219 = vmatpush1.msra.mxu0 %v195
      %220 = vmatprep.subr.mxu0 0.0
      %221 = vmatpush1.msra.mxu0 %v196
      %222 = vmatprep.subr.mxu0 0.0
      %223 = vmatpush1.msra.mxu0 %v197
      %224 = vmatprep.subr.mxu0 0.0
      %225 = vmatpush1.msra.mxu0 %v198
      %226 = vmatprep.subr.mxu0 0.0
      %227 = vmatpush1.msra.mxu0 %v199
      %228 = vmatprep.subr.mxu0 0.0
      %229 = vmatpush1.msra.mxu0 %v200
      %230 = vmatprep.subr.mxu0 0.0
      %231 = vmatpush1.msra.mxu0 %v201
      %232 = vmatprep.subr.mxu0 0.0
      %233 = vmatpush1.msra.mxu0 %v202
      %234 = vmatprep.subr.mxu0 0.0
      %235 = vmatpush1.msra.mxu0 %v203
      %236 = vmatprep.subr.mxu0 0.0
      %237 = vmatpush1.msra.mxu0 %v204
      %238 = vmatprep.subr.mxu0 0.0
      %239 = vmatpush1.msra.mxu0 %v205
      %240 = vmatprep.subr.mxu0 0.0
      %241 = vmatpush1.msra.mxu0 %v206
      %242 = vmatprep.subr.mxu0 0.0
      %243 = vmatpush1.msra.mxu0 %v207
      %244 = vmatprep.subr.mxu0 0.0
      %245 = vmatpush1.msra.mxu0 %v208
      %246 = vmatprep.subr.mxu0 0.0
      %247 = vmatpush1.msra.mxu0 %v209
      %248 = vmatprep.subr.mxu0 0.0
      %249 = vmatpush1.msra.mxu0 %v210
      %250 = vmatprep.subr.mxu0 0.0
      %251 = vmatpush1.msra.mxu0 0.0
      %252 = vmatprep.subr.mxu0 0.0
      %253 = vmatpush1.msra.mxu0 0.0
      %254 = vmatprep.subr.mxu0 0.0
      %255 = vmatpush1.msra.mxu0 0.0
      %256 = vmatprep.subr.mxu0 0.0
      %257 = vmatpush1.msra.mxu0 0.0
      %258 = vmatprep.subr.mxu0 0.0
      %259 = vmatpush1.msra.mxu0 0.0
      %260 = vmatprep.subr.mxu0 0.0
      %261 = vmatpush1.msra.mxu0 0.0
      %262 = vmatprep.subr.mxu0 0.0
      %263 = vmatpush1.msra.mxu0 0.0
      %264 = vmatprep.subr.mxu0 0.0
      %265 = vmatpush1.msra.mxu0 0.0
      %266 = vmatprep.subr.mxu0 0.0
      %267 = vmatpush1.msra.mxu0 0.0
      %268 = vmatprep.subr.mxu0 0.0
      %269 = vmatpush1.msra.mxu0 0.0
      %270 = vmatprep.subr.mxu0 0.0
      %271 = vmatpush1.msra.mxu0 0.0
      %272 = vmatprep.subr.mxu0 0.0
      %273 = vmatpush1.msra.mxu0 0.0
      %274 = vmatprep.subr.mxu0 0.0
      %275 = vmatpush1.msra.mxu0 0.0
      %276 = vmatprep.subr.mxu0 0.0
      %277 = vmatpush1.msra.mxu0 0.0
      %278 = vmatprep.subr.mxu0 0.0
      %279 = vmatpush1.msra.mxu0 0.0
      %280 = vmatprep.subr.mxu0 0.0
      %281 = vmatpush1.msra.mxu0 0.0
      %282 = vmatprep.mubr.f32.mxu0 0.0
      %283 = vmatmul.mubr.f32.gmra.mrb[0].mxu0 %v193
      %v284 = vpop.f32.mrb[0].mxu0
      %v285 = vadd.f32 %v216, %v284
      %v286 = vpop.f32.mrb[0].mxu0
      %287 = vmatprep.mubr.f32.mxu0 0.0
      %288 = vmatmul.mubr.f32.gmra.mrb[0].mxu0 %v194
      %v289 = vpop.f32.mrb[0].mxu0
      %v290 = vadd.f32 %v216, %v289
      %v291 = vpop.f32.mrb[0].mxu0
      %292 = vdwg.mxu0
      %293 = vst [vmem:[#allocation9] sm:$0xff] %v285
      %294 = vst [vmem:[#allocation9 + $0x8] sm:$0xff] %v290
    $region37: #{tpu_custom_call.1} parent=1 // pred_fallthru
      _
    // Predicated region
    $region38: #{tpu_custom_call.1} parent=1 // pred_check
      _
    $region39: #{tpu_custom_call.1} parent=1 // pred_check_branch
      %296 = sbr.rel (0) target = $region41
    $region40: #{tpu_custom_call.1} parent=1 // pred_region
      %s298 = ssub.s32 256, 256
      %299 = vsyncadd [#allocation5], %s298
      %s300 = sshll.u32 [#allocation9], 4
      %s301 = int_to_ptr.vmem [resolvable:$true] %s300
      %306 = dma.vmem_to_hbm [thread:$0]  %s301, 256, %s4, [#allocation5], 128, 128, 8
    $region41: #{tpu_custom_call.1} parent=1 // pred_fallthru
      _
    // Predicated region
    $region42: #{tpu_custom_call.1} parent=1 // pred_check
      _
    $region43: #{tpu_custom_call.1} parent=1 // pred_check_branch
      %308 = sbr.rel (0) target = $region45
    $region44: #{tpu_custom_call.1} parent=1 // pred_region
      %309 = dma.done [#allocation5], 256
    $region45: #{tpu_custom_call.1} parent=1 // pred_fallthru
      _
    %310 = vsyncpa [#allocation4], 1
    %311 = vsyncpa [#allocation7], 1
    %312 = vsyncpa [#allocation5], 1

</llo_original>
